<compile_context>
chip_gen: v7x
topology: tpu7x:2x2x1
jax: 0.10.0
libtpu: 0.0.40
codegen_flags: <defaults>
</compile_context>

<pallas_src>
import functools

import jax
import jax.numpy as jnp
from jax.experimental import pallas as pl
from jax.experimental.pallas import tpu as pltpu


# ----------------------------- Pallas kernel --------------------------------
def _gated_conv_kernel(x_ref, w_ref, b_ref, o_ref):
    # x_ref : (Hp, Wp*C_in)              f32   padded input rows, one image
    # w_ref : (kh, Wp*C_in, 2*Wo*C_out)  bf16  folded/fused conv weights
    # b_ref : (1, 2*Wo*C_out)            f32   fused bias (feature | gate lanes)
    # o_ref : (Ho, Wo*C_out)             f32   gated output, lane-dense
    ho, lanes = o_ref.shape
    kh = w_ref.shape[0]

    acc = jnp.zeros((ho, 2 * lanes), jnp.float32)
    for di in range(kh):                      # static unroll over kernel rows
        xs = x_ref[di:di + ho, :].astype(jnp.bfloat16)
        acc = acc + jnp.dot(xs, w_ref[di], preferred_element_type=jnp.float32)
    acc = acc + b_ref[...]                    # single fused bias add

    f = acc[:, :lanes]                        # aligned 128-lane slices
    g = acc[:, lanes:]
    # sigmoid via EUP exp + approx reciprocal (keeps VPU slots free)
    sig = pl.reciprocal(1.0 + jnp.exp(-g), approx=True)
    o_ref[...] = f * sig


# ----------------------------- wrapper ---------------------------------------
@functools.partial(jax.jit, static_argnames=("pad",))
def gated_conv2d(x_nchw, weight, bias, *, pad=1):
    """x_nchw: (N, C_in, H, W); weight: (2*C_out, C_in, kH, kW); bias: (2*C_out,).

    Stride is fixed to 1 (canonical gated conv).
    """
    n, c_in, h, w = x_nchw.shape
    two_cout, _, kh, kw = weight.shape
    c_out = two_cout // 2
    hp, wp = h + 2 * pad, w + 2 * pad
    ho, wo = hp - kh + 1, wp - kw + 1
    lanes = wo * c_out                         # output lane width (128 here)

    # ---- host-side glue: layout only, no patch-matrix expansion ----
    x_nhwc = jnp.transpose(x_nchw, (0, 2, 3, 1)).astype(jnp.float32)
    x_padded = jnp.pad(x_nhwc, ((0, 0), (pad, pad), (pad, pad), (0, 0)))
    x_flat = x_padded.reshape(n, hp, wp * c_in)          # (N, Hp, Wp*C_in)

    # Fold kw taps + channel projection + feature/gate fusion + output lane
    # layout into one weight per kernel row: W_big[di] : (Wp*C_in, 2*Wo*C_out)
    #   W_big[di, iw*C_in+ci, ow*C_out+c]            = W_f[c, ci, di, iw-ow]
    #   W_big[di, iw*C_in+ci, Wo*C_out + ow*C_out+c] = W_g[c, ci, di, iw-ow]
    w_taps = jnp.transpose(weight.astype(jnp.float32), (2, 3, 1, 0))  # (kh,kw,C_in,2C)
    iw = jnp.arange(wp)[None, :, None]
    ow = jnp.arange(wo)[None, None, :]
    dj = jnp.arange(kw)[:, None, None]
    sel = (iw == ow + dj).astype(jnp.float32)                         # (kw, Wp, Wo)
    big = jnp.einsum("jpo,ijcf->ipcof", sel, w_taps)                  # (kh,Wp,C_in,Wo,2C)
    w_big = jnp.concatenate(
        [big[..., :c_out].reshape(kh, wp * c_in, lanes),
         big[..., c_out:].reshape(kh, wp * c_in, lanes)],
        axis=-1,
    ).astype(jnp.bfloat16)                                            # (kh, Wp*C_in, 2*lanes)

    b_big = jnp.concatenate(
        [jnp.tile(bias[:c_out].astype(jnp.float32), wo),
         jnp.tile(bias[c_out:].astype(jnp.float32), wo)]
    ).reshape(1, 2 * lanes)

    flops = int(n) * int(kh) * 2 * int(ho) * int(wp * c_in) * int(2 * lanes)
    bytes_accessed = (x_flat.size * 4 + w_big.size * 2 + b_big.size * 4
                      + n * ho * lanes * 4)

    out_lane = pl.pallas_call(
        _gated_conv_kernel,
        out_shape=jax.ShapeDtypeStruct((n, ho, lanes), jnp.float32),
        grid_spec=pltpu.PrefetchScalarGridSpec(
            num_scalar_prefetch=0,
            grid=(n,),
            in_specs=[
                pl.BlockSpec((None, hp, wp * c_in), lambda i: (i, 0, 0)),   # x rows
                pl.BlockSpec((kh, wp * c_in, 2 * lanes), lambda i: (0, 0, 0)),  # W_big
                pl.BlockSpec((1, 2 * lanes), lambda i: (0, 0)),             # bias
            ],
            out_specs=pl.BlockSpec((None, ho, lanes), lambda i: (i, 0, 0)),
        ),
        compiler_params=pltpu.CompilerParams(
            dimension_semantics=("parallel",),          # shards across TCs on v7x
            vmem_limit_bytes=32 * 1024 * 1024,          # explicit; safe on 64 MiB v7x
        ),
        cost_estimate=pl.CostEstimate(
            flops=flops,
            transcendentals=2 * int(n) * int(ho) * int(lanes),
            bytes_accessed=int(bytes_accessed),
        ),
    )(x_flat, w_big, b_big)

    # (N, Ho, Wo*C_out) -> NCHW
    out = out_lane.reshape(n, ho, wo, c_out)
    return jnp.transpose(out, (0, 3, 1, 2))


# ----------------------------- reference (pure JAX) --------------------------
def _reference(x_nchw, weight, bias, stride=1, pad=1):
    h = jax.lax.conv_general_dilated(
        x_nchw.astype(jnp.float32),
        weight.astype(jnp.float32),
        window_strides=(stride, stride),
        padding=[(pad, pad), (pad, pad)],
        dimension_numbers=("NCHW", "OIHW", "NCHW"),
    ) + bias.reshape(1, -1, 1, 1)
    c_out = weight.shape[0] // 2
    f, g = h[:, :c_out], h[:, c_out:]
    return f * jax.nn.sigmoid(g)


if __name__ == "__main__":
    key = jax.random.PRNGKey(0)
    k_x, k_w, k_b = jax.random.split(key, 3)

    N, C_IN, H, W = 2, 4, 16, 16
    C_OUT, KH, KW = 8, 3, 3

    x = jax.random.normal(k_x, (N, C_IN, H, W), dtype=jnp.float32)
    # Deterministic PyTorch-ish init scale: U(-s, s), s = 1/sqrt(C_in*kH*kW)
    s = 1.0 / jnp.sqrt(jnp.float32(C_IN * KH * KW))
    weight = jax.random.uniform(k_w, (2 * C_OUT, C_IN, KH, KW),
                                dtype=jnp.float32, minval=-s, maxval=s)
    bias = jax.random.uniform(k_b, (2 * C_OUT,),
                              dtype=jnp.float32, minval=-s, maxval=s)

    out = gated_conv2d(x, weight, bias, pad=1)
    out = jax.block_until_ready(out)
    assert out.shape == (N, C_OUT, H, W)

    # Full-precision reference (loose tol: kernel feeds the MXU in bf16).
    ref_f32 = _reference(x, weight, bias)
    assert jnp.allclose(out, ref_f32, atol=5e-2, rtol=5e-2)

    # bf16-rounded-input reference (tighter tol: isolates kernel math).
    ref_bf16 = _reference(x.astype(jnp.bfloat16).astype(jnp.float32),
                          weight.astype(jnp.bfloat16).astype(jnp.float32), bias)
    assert jnp.allclose(out, ref_bf16, atol=2e-2, rtol=2e-2)

    print("KERNEL_OK")
</pallas_src>

<mosaic_0001>
module attributes {stable_mosaic.version = 11 : i64} {
  func.func @_gated_conv_kernel(%arg0: i32, %arg1: memref<1x18x72xf32, #tpu.memory_space<vmem>>, %arg2: memref<3x72x256xbf16, #tpu.memory_space<vmem>>, %arg3: memref<1x256xf32, #tpu.memory_space<vmem>>, %arg4: memref<1x16x128xf32, #tpu.memory_space<vmem>>) attributes {dimension_semantics = [#tpu.dimension_semantics<parallel>], iteration_bounds = array<i64: 2>, scalar_prefetch = 0 : i64, scratch_operands = 0 : i64, tpu.core_type = #tpu.core_type<tc>, window_params = [{transform_indices = @transform_0, window_bounds = array<i64: 1, 18, 72>}, {pipeline_mode = #tpu.pipeline_mode<synchronous>, transform_indices = @transform_1, window_bounds = array<i64: 3, 72, 256>}, {pipeline_mode = #tpu.pipeline_mode<synchronous>, transform_indices = @transform_2, window_bounds = array<i64: 1, 256>}, {transform_indices = @transform_3, window_bounds = array<i64: 1, 16, 128>}]} {
    %cst = arith.constant 0.000000e+00 : f32
    %0 = vector.broadcast %cst : f32 to vector<16x256xf32>
    %c0 = arith.constant 0 : index
    %c0_0 = arith.constant 0 : index
    %c0_1 = arith.constant 0 : index
    %1 = vector.load %arg1[%c0, %c0_0, %c0_1] : memref<1x18x72xf32, #tpu.memory_space<vmem>>, vector<1x16x72xf32>
    %2 = vector.shape_cast %1 : vector<1x16x72xf32> to vector<16x72xf32>
    %3 = arith.truncf %2 : vector<16x72xf32> to vector<16x72xbf16>
    %c0_2 = arith.constant 0 : index
    %c0_3 = arith.constant 0 : index
    %c0_4 = arith.constant 0 : index
    %4 = vector.load %arg2[%c0_2, %c0_3, %c0_4] : memref<3x72x256xbf16, #tpu.memory_space<vmem>>, vector<1x72x256xbf16>
    %5 = vector.shape_cast %4 : vector<1x72x256xbf16> to vector<72x256xbf16>
    %cst_5 = arith.constant dense<0.000000e+00> : vector<16x256xf32>
    %6 = tpu.matmul %3, %5, %cst_5 {dimension_numbers = #tpu.dot_dimension_numbers<[1], [0], [0], [1], [0, 0, 1, 1], [], []>} : vector<16x72xbf16>, vector<72x256xbf16>, vector<16x256xf32> -> vector<16x256xf32>
    %7 = arith.addf %0, %6 : vector<16x256xf32>
    %c0_6 = arith.constant 0 : index
    %c1 = arith.constant 1 : index
    %c0_7 = arith.constant 0 : index
    %8 = vector.load %arg1[%c0_6, %c1, %c0_7] : memref<1x18x72xf32, #tpu.memory_space<vmem>>, vector<1x16x72xf32>
    %9 = vector.shape_cast %8 : vector<1x16x72xf32> to vector<16x72xf32>
    %10 = arith.truncf %9 : vector<16x72xf32> to vector<16x72xbf16>
    %c1_8 = arith.constant 1 : index
    %c0_9 = arith.constant 0 : index
    %c0_10 = arith.constant 0 : index
    %11 = vector.load %arg2[%c1_8, %c0_9, %c0_10] : memref<3x72x256xbf16, #tpu.memory_space<vmem>>, vector<1x72x256xbf16>
    %12 = vector.shape_cast %11 : vector<1x72x256xbf16> to vector<72x256xbf16>
    %cst_11 = arith.constant dense<0.000000e+00> : vector<16x256xf32>
    %13 = tpu.matmul %10, %12, %cst_11 {dimension_numbers = #tpu.dot_dimension_numbers<[1], [0], [0], [1], [0, 0, 1, 1], [], []>} : vector<16x72xbf16>, vector<72x256xbf16>, vector<16x256xf32> -> vector<16x256xf32>
    %14 = arith.addf %7, %13 : vector<16x256xf32>
    %c0_12 = arith.constant 0 : index
    %c2 = arith.constant 2 : index
    %c0_13 = arith.constant 0 : index
    %15 = vector.load %arg1[%c0_12, %c2, %c0_13] : memref<1x18x72xf32, #tpu.memory_space<vmem>>, vector<1x16x72xf32>
    %16 = vector.shape_cast %15 : vector<1x16x72xf32> to vector<16x72xf32>
    %17 = arith.truncf %16 : vector<16x72xf32> to vector<16x72xbf16>
    %c2_14 = arith.constant 2 : index
    %c0_15 = arith.constant 0 : index
    %c0_16 = arith.constant 0 : index
    %18 = vector.load %arg2[%c2_14, %c0_15, %c0_16] : memref<3x72x256xbf16, #tpu.memory_space<vmem>>, vector<1x72x256xbf16>
    %19 = vector.shape_cast %18 : vector<1x72x256xbf16> to vector<72x256xbf16>
    %cst_17 = arith.constant dense<0.000000e+00> : vector<16x256xf32>
    %20 = tpu.matmul %17, %19, %cst_17 {dimension_numbers = #tpu.dot_dimension_numbers<[1], [0], [0], [1], [0, 0, 1, 1], [], []>} : vector<16x72xbf16>, vector<72x256xbf16>, vector<16x256xf32> -> vector<16x256xf32>
    %21 = arith.addf %14, %20 : vector<16x256xf32>
    %c0_18 = arith.constant 0 : index
    %c0_19 = arith.constant 0 : index
    %22 = vector.load %arg3[%c0_18, %c0_19] : memref<1x256xf32, #tpu.memory_space<vmem>>, vector<1x256xf32>
    %23 = vector.broadcast %22 : vector<1x256xf32> to vector<16x256xf32>
    %24 = arith.addf %21, %23 : vector<16x256xf32>
    %25 = vector.extract_strided_slice %24 {offsets = [0, 0], sizes = [16, 128], strides = [1, 1]} : vector<16x256xf32> to vector<16x128xf32>
    %26 = vector.extract_strided_slice %24 {offsets = [0, 128], sizes = [16, 128], strides = [1, 1]} : vector<16x256xf32> to vector<16x128xf32>
    %cst_20 = arith.constant 0.000000e+00 : f32
    %27 = vector.broadcast %cst_20 : f32 to vector<16x128xf32>
    %28 = arith.subf %27, %26 : vector<16x128xf32>
    %29 = math.exp %28 : vector<16x128xf32>
    %cst_21 = arith.constant 1.000000e+00 : f32
    %30 = vector.broadcast %cst_21 : f32 to vector<16x128xf32>
    %31 = arith.addf %30, %29 : vector<16x128xf32>
    %32 = tpu.reciprocal %31 {approx = true} : vector<16x128xf32> -> vector<16x128xf32>
    %33 = arith.mulf %25, %32 : vector<16x128xf32>
    %c0_22 = arith.constant 0 : index
    %c0_23 = arith.constant 0 : index
    %c0_24 = arith.constant 0 : index
    %34 = vector.load %arg4[%c0_22, %c0_23, %c0_24] : memref<1x16x128xf32, #tpu.memory_space<vmem>>, vector<1x16x128xf32>
    %35 = vector.shape_cast %34 : vector<1x16x128xf32> to vector<16x128xf32>
    %36 = vector.shape_cast %33 : vector<16x128xf32> to vector<1x16x128xf32>
    tpu.vector_store %arg4[%c0_22, %c0_23, %c0_24], %36 {strides = array<i32>} : memref<1x16x128xf32, #tpu.memory_space<vmem>>, vector<1x16x128xf32>,
    return
  }
  func.func @transform_0(%arg0: i32) -> (i32, i32, i32) {
    %c0_i32 = arith.constant 0 : i32
    %c0_i32_0 = arith.constant 0 : i32
    %c0_i32_1 = arith.constant 0 : i32
    return %arg0, %c0_i32, %c0_i32_0 : i32, i32, i32
  }
  func.func @transform_1(%arg0: i32) -> (i32, i32, i32) {
    %c0_i32 = arith.constant 0 : i32
    %c0_i32_0 = arith.constant 0 : i32
    %c0_i32_1 = arith.constant 0 : i32
    %c0_i32_2 = arith.constant 0 : i32
    return %c0_i32, %c0_i32_0, %c0_i32_1 : i32, i32, i32
  }
  func.func @transform_2(%arg0: i32) -> (i32, i32) {
    %c0_i32 = arith.constant 0 : i32
    %c0_i32_0 = arith.constant 0 : i32
    %c0_i32_1 = arith.constant 0 : i32
    return %c0_i32, %c0_i32_0 : i32, i32
  }
  func.func @transform_3(%arg0: i32) -> (i32, i32, i32) {
    %c0_i32 = arith.constant 0 : i32
    %c0_i32_0 = arith.constant 0 : i32
    %c0_i32_1 = arith.constant 0 : i32
    return %arg0, %c0_i32, %c0_i32_0 : i32, i32, i32
  }
}

</mosaic_0001>

<llo_original>
// kernel: tile.13
$region0: #{tile.13}
  #allocation0 [shape = 's32[1]{0}', space=sflag, size = 0x4, scoped, tag = 'scoped memory for tile.13']
  %s0 = inlined_call_operand.vmem [shape: f32[8], index: 0, kind: input, shape index: {}]
  %s1 = inlined_call_operand.vmem [shape: f32[16,8], index: 1, kind: output, shape index: {}]
  // Predicated region
  $region2: #{tile.13} parent=0 // pred_check
    _
  $region3: #{tile.13} parent=0 // pred_check_branch
    %3 = sbr.rel (0) target = $region5
  $region4: #{tile.13} parent=0 // pred_region
    _
  $region5: #{tile.13} parent=0 // pred_fallthru
    _
  %v4 = vld [vmem:[%s0] ss:$0 sm:$0xff]
  %5 = vst [vmem:[%s1] sm:$0xff] %v4
  %s6 = scalar_lea.vmem %s1, 8
  %7 = vst [vmem:[%s6] sm:$0xff] %v4

// kernel: tile.14
$region0: #{tile.14}
  %s0 = inlined_call_operand.vmem [shape: f32[16,8], index: 0, kind: input, shape index: {}]
  %s1 = inlined_call_operand.vmem [shape: f32[128], index: 1, kind: output, shape index: {}]
  $region1: #{tile.14} parent=0
    #allocation0 [shape = 'u8[4096]{0}', space=vmem, size = 0x1000, scoped, tag = 'scoped mem for output reshape']
    %v2 = vld [vmem:[%s0] sm:$0x1]
    %vm3 = vcmask 64512
    %4 = vst.msk [vmem:[#allocation0] sm:$0x1] %vm3, %v2
    %s5 = scalar_lea.vmem %s0, 15
    %v6 = vld [vmem:[%s5] sm:$0x1]
    %7 = vrot.lane.b32.xlu0 %v6, 120
    %v8 = vpop.permute.xlu0 %7
    %vm9 = vcmask 1048512
    %10 = vst.msk [vmem:[#allocation0] sm:$0x1] %vm9, %v8
    %s11 = scalar_lea.vmem %s0, 14
    %v12 = vld [vmem:[%s11] sm:$0x1]
    %13 = vrot.lane.b32.xlu0 %v12, 112
    %v14 = vpop.permute.xlu0 %13
    %vm15 = vcmask 982912
    %16 = vst.msk [vmem:[#allocation0] sm:$0x1] %vm15, %v14
    %s17 = scalar_lea.vmem %s0, 13
    %v18 = vld [vmem:[%s17] sm:$0x1]
    %19 = vrot.lane.b32.xlu0 %v18, 104
    %v20 = vpop.permute.xlu0 %19
    %vm21 = vcmask 917312
    %22 = vst.msk [vmem:[#allocation0] sm:$0x1] %vm21, %v20
    %s23 = scalar_lea.vmem %s0, 12
    %v24 = vld [vmem:[%s23] sm:$0x1]
    %25 = vrot.lane.b32.xlu0 %v24, 96
    %v26 = vpop.permute.xlu0 %25
    %vm27 = vcmask 851712
    %28 = vst.msk [vmem:[#allocation0] sm:$0x1] %vm27, %v26
    %s29 = scalar_lea.vmem %s0, 11
    %v30 = vld [vmem:[%s29] sm:$0x1]
    %31 = vrot.lane.b32.xlu0 %v30, 88
    %v32 = vpop.permute.xlu0 %31
    %vm33 = vcmask 786112
    %34 = vst.msk [vmem:[#allocation0] sm:$0x1] %vm33, %v32
    %s35 = scalar_lea.vmem %s0, 10
    %v36 = vld [vmem:[%s35] sm:$0x1]
    %37 = vrot.lane.b32.xlu0 %v36, 80
    %v38 = vpop.permute.xlu0 %37
    %vm39 = vcmask 720512
    %40 = vst.msk [vmem:[#allocation0] sm:$0x1] %vm39, %v38
    %s41 = scalar_lea.vmem %s0, 9
    %v42 = vld [vmem:[%s41] sm:$0x1]
    %43 = vrot.lane.b32.xlu0 %v42, 72
    %v44 = vpop.permute.xlu0 %43
    %vm45 = vcmask 654912
    %46 = vst.msk [vmem:[#allocation0] sm:$0x1] %vm45, %v44
    %s47 = scalar_lea.vmem %s0, 8
    %v48 = vld [vmem:[%s47] sm:$0x1]
    %49 = vrot.lane.b32.xlu0 %v48, 64
    %v50 = vpop.permute.xlu0 %49
    %vm51 = vcmask 589312
    %52 = vst.msk [vmem:[#allocation0] sm:$0x1] %vm51, %v50
    %s53 = scalar_lea.vmem %s0, 7
    %v54 = vld [vmem:[%s53] sm:$0x1]
    %55 = vrot.lane.b32.xlu0 %v54, 56
    %v56 = vpop.permute.xlu0 %55
    %vm57 = vcmask 523712
    %58 = vst.msk [vmem:[#allocation0] sm:$0x1] %vm57, %v56
    %s59 = scalar_lea.vmem %s0, 6
    %v60 = vld [vmem:[%s59] sm:$0x1]
    %61 = vrot.lane.b32.xlu0 %v60, 48
    %v62 = vpop.permute.xlu0 %61
    %vm63 = vcmask 458112
    %64 = vst.msk [vmem:[#allocation0] sm:$0x1] %vm63, %v62
    %s65 = scalar_lea.vmem %s0, 5
    %v66 = vld [vmem:[%s65] sm:$0x1]
    %67 = vrot.lane.b32.xlu0 %v66, 40
    %v68 = vpop.permute.xlu0 %67
    %vm69 = vcmask 392512
    %70 = vst.msk [vmem:[#allocation0] sm:$0x1] %vm69, %v68
    %s71 = scalar_lea.vmem %s0, 4
    %v72 = vld [vmem:[%s71] sm:$0x1]
    %73 = vrot.lane.b32.xlu0 %v72, 32
    %v74 = vpop.permute.xlu0 %73
    %vm75 = vcmask 326912
    %76 = vst.msk [vmem:[#allocation0] sm:$0x1] %vm75, %v74
    %s77 = scalar_lea.vmem %s0, 3
    %v78 = vld [vmem:[%s77] sm:$0x1]
    %79 = vrot.lane.b32.xlu0 %v78, 24
    %v80 = vpop.permute.xlu0 %79
    %vm81 = vcmask 261312
    %82 = vst.msk [vmem:[#allocation0] sm:$0x1] %vm81, %v80
    %s83 = scalar_lea.vmem %s0, 2
    %v84 = vld [vmem:[%s83] sm:$0x1]
    %85 = vrot.lane.b32.xlu0 %v84, 16
    %v86 = vpop.permute.xlu0 %85
    %vm87 = vcmask 195712
    %88 = vst.msk [vmem:[#allocation0] sm:$0x1] %vm87, %v86
    %s89 = scalar_lea.vmem %s0, 1
    %v90 = vld [vmem:[%s89] sm:$0x1]
    %91 = vrot.lane.b32.xlu0 %v90, 8
    %v92 = vpop.permute.xlu0 %91
    %vm93 = vcmask 130112
    %94 = vst.msk [vmem:[#allocation0] sm:$0x1] %vm93, %v92
    %s96 = sshllo.u32 0, 1
    %v98 = vld [vmem:[#allocation0] sm:%s96]
    %s99 = sshllo.u32 0, 1
    %100 = vst [vmem:[%s1] sm:%s99] %v98

// kernel: gated_conv2d.1
$region0: #{gated_conv2d.1}
  #allocation0 [shape = 'u32[]', space=smem, size = 0x4, offset = 0x4, fixed_abs, tag = 'smem constant byte address 0x4 - core index']
  #allocation1 [shape = 'u32[144,128]{1,0:T(1,128)}', space=vmem, size = 0x12000, scoped, tag = 'internal scratch']
  %s0 = inlined_call_operand.vmem [shape: f32[2,18,72], index: 0, kind: input, shape index: {}]
  %s1 = inlined_call_operand.vmem [shape: bf16[3,72,256], index: 1, kind: input, shape index: {}]
  %s2 = inlined_call_operand.vmem [shape: f32[1,256], index: 2, kind: input, shape index: {}]
  %s3 = inlined_call_operand.vmem [shape: f32[2,16,128], index: 3, kind: output, shape index: {}]
  %s4 = sld [smem:[#allocation0]]
  $region45: #{gated_conv2d.1} parent=0
    _
  %s6 = ssub.s32 1, %s4
  %s7 = scalar_select 0, %s6, %s4
  loop: start=0, step=1, limit=4
  $region2: #{gated_conv2d.1} parent=0 // loop_pre_header
    _
  $region3: #{gated_conv2d.1} parent=0 // loop_header
    %s9 = sphi 0, %s13
    %p10 = scmp.ge.s32.totalorder %s9, 4
    %s19 = sphi 0, %s21
    %s22 = sphi 0, %s19
    %s23 = sphi 0, %s22
    %s39 = sphi 0, %s23
    %s43 = sphi 0, %s43
    %s45 = sphi 0, %s43
    %s46 = sphi 0, %s45
    %s60 = sphi 0, %s46
    %s64 = sphi 0, %s64
    %s66 = sphi 0, %s64
    %s67 = sphi 0, %s66
    %s81 = sphi 0, %s67
    %s87 = sphi 0, %s89
    %s90 = sphi 0, %s87
    %s91 = sphi 0, %s90
    %s107 = sphi 0, %s91
  $region4: #{gated_conv2d.1} parent=0 // loop_header_branch
    %12 = sbr.rel (%p10) target = $region8
  $region5: #{gated_conv2d.1} parent=0 // loop_body
    %s14 = ssub.s32 %s9, 1
    %s15 = ssub.s32 %s9, 2
    %s16 = sadd.s32 %s9, 1
    %s17 = ssub.s32 %s9, %s16
    %p18 = scmp.eq.s32.totalorder %s17, 0
    %s20 = sadd.s32 %s19, 1
    %s21 = scalar_select %p18, %s19, %s20
    %p24 = pneg %p18
    %p25 = scmp.eq.s32.totalorder %s9, 1
    %p26 = por %p24, %p25
    %p27 = scmp.ne.s32.totalorder %s19, %s22
    %p28 = scmp.eq.s32.totalorder %s9, 0
    %p29 = por %p27, %p28
    %p30 = scmp.ne.s32.totalorder %s19, %s22
    %p31 = scmp.eq.s32.totalorder %s14, 1
    %p32 = por %p30, %p31
    %p33 = scmp.ne.s32.totalorder %s22, %s23
    %p34 = scmp.eq.s32.totalorder %s14, 0
    %p35 = por %p33, %p34
    %p36 = scmp.ne.s32.totalorder %s22, %s23
    %p37 = scmp.eq.s32.totalorder %s15, 1
    %p38 = por %p36, %p37
    %p40 = scmp.ne.s32.totalorder %s23, %s39
    %p41 = scmp.eq.s32.totalorder %s15, 0
    %p42 = por %p40, %p41
    %s44 = sadd.s32 %s43, 1
    %p47 = scmp.eq.s32.totalorder %s9, 1
    %p48 = scmp.ne.s32.totalorder %s43, %s45
    %p49 = scmp.eq.s32.totalorder %s9, 0
    %p50 = por %p48, %p49
    %p51 = scmp.ne.s32.totalorder %s43, %s45
    %p52 = scmp.eq.s32.totalorder %s14, 1
    %p53 = por %p51, %p52
    %p54 = scmp.ne.s32.totalorder %s45, %s46
    %p55 = scmp.eq.s32.totalorder %s14, 0
    %p56 = por %p54, %p55
    %p57 = scmp.ne.s32.totalorder %s45, %s46
    %p58 = scmp.eq.s32.totalorder %s15, 1
    %p59 = por %p57, %p58
    %p61 = scmp.ne.s32.totalorder %s46, %s60
    %p62 = scmp.eq.s32.totalorder %s15, 0
    %p63 = por %p61, %p62
    %s65 = sadd.s32 %s64, 1
    %p68 = scmp.eq.s32.totalorder %s9, 1
    %p69 = scmp.ne.s32.totalorder %s64, %s66
    %p70 = scmp.eq.s32.totalorder %s9, 0
    %p71 = por %p69, %p70
    %p72 = scmp.ne.s32.totalorder %s64, %s66
    %p73 = scmp.eq.s32.totalorder %s14, 1
    %p74 = por %p72, %p73
    %p75 = scmp.ne.s32.totalorder %s66, %s67
    %p76 = scmp.eq.s32.totalorder %s14, 0
    %p77 = por %p75, %p76
    %p78 = scmp.ne.s32.totalorder %s66, %s67
    %p79 = scmp.eq.s32.totalorder %s15, 1
    %p80 = por %p78, %p79
    %p82 = scmp.ne.s32.totalorder %s67, %s81
    %p83 = scmp.eq.s32.totalorder %s15, 0
    %p84 = por %p82, %p83
    %s85 = ssub.s32 %s9, %s16
    %p86 = scmp.eq.s32.totalorder %s85, 0
    %s88 = sadd.s32 %s87, 1
    %s89 = scalar_select %p86, %s87, %s88
    %p92 = pneg %p86
    %p93 = scmp.eq.s32.totalorder %s9, 1
    %p94 = por %p92, %p93
    %p95 = scmp.ne.s32.totalorder %s87, %s90
    %p96 = scmp.eq.s32.totalorder %s9, 0
    %p97 = por %p95, %p96
    %p98 = scmp.ne.s32.totalorder %s87, %s90
    %p99 = scmp.eq.s32.totalorder %s14, 1
    %p100 = por %p98, %p99
    %p101 = scmp.ne.s32.totalorder %s90, %s91
    %p102 = scmp.eq.s32.totalorder %s14, 0
    %p103 = por %p101, %p102
    %p104 = scmp.ne.s32.totalorder %s90, %s91
    %p105 = scmp.eq.s32.totalorder %s15, 1
    %p106 = por %p104, %p105
    %p108 = scmp.ne.s32.totalorder %s91, %s107
    %p109 = scmp.eq.s32.totalorder %s15, 0
    %p110 = por %p108, %p109
    %p111 = scmp.le.s32.totalorder 1, %s9
    %p112 = scmp.lt.s32.totalorder %s9, 3
    %p113 = pnand %p111, %p112
    %p114 = pneg %p113
    // Predicated region
    $region9: #{gated_conv2d.1} parent=5 // pred_check
      _
    $region10: #{gated_conv2d.1} parent=5 // pred_check_branch
      %116 = sbr.rel (%p113) target = $region12
    $region11: #{gated_conv2d.1} parent=5 // pred_region
      %s117 = ssub.s32 %s9, 1
      // Predicated region
      $region13: #{gated_conv2d.1} parent=11 // pred_check
        %p118 = pneg %p56
      $region14: #{gated_conv2d.1} parent=11 // pred_check_branch
        %120 = sbr.rel (%p118) target = $region16
      $region15: #{gated_conv2d.1} parent=11 // pred_region
        _
      $region16: #{gated_conv2d.1} parent=11 // pred_fallthru
        _
      // Predicated region
      $region17: #{gated_conv2d.1} parent=11 // pred_check
        %p121 = pneg %p77
      $region18: #{gated_conv2d.1} parent=11 // pred_check_branch
        %123 = sbr.rel (%p121) target = $region20
      $region19: #{gated_conv2d.1} parent=11 // pred_region
        _
      $region20: #{gated_conv2d.1} parent=11 // pred_fallthru
        _
    $region12: #{gated_conv2d.1} parent=5 // pred_fallthru
      _
    %p124 = scmp.lt.s32.totalorder %s9, 2
    // Predicated region
    $region21: #{gated_conv2d.1} parent=5 // pred_check
      %p125 = pneg %p124
    $region22: #{gated_conv2d.1} parent=5 // pred_check_branch
      %127 = sbr.rel (%p125) target = $region24
    $region23: #{gated_conv2d.1} parent=5 // pred_region
      // Predicated region
      $region25: #{gated_conv2d.1} parent=23 // pred_check
        %p128 = pneg %p29
      $region26: #{gated_conv2d.1} parent=23 // pred_check_branch
        %130 = sbr.rel (%p128) target = $region28
      $region27: #{gated_conv2d.1} parent=23 // pred_region
        %p131 = scmp.lt.s32.totalorder %s9, 1
        %s132 = scalar_select %p131, %s9, 1
        %s133 = smul.addr %s132, 3
        %s134 = smul.addr %s133, 8
        %s135 = scalar_lea.vmem %s0, %s134
      $region28: #{gated_conv2d.1} parent=23 // pred_fallthru
        _
    $region24: #{gated_conv2d.1} parent=5 // pred_fallthru
      _
    %p136 = scmp.le.s32.totalorder 1, %s9
    %p137 = scmp.lt.s32.totalorder %s9, 3
    %p138 = pnand %p136, %p137
    %p139 = pneg %p138
    // Predicated region
    $region29: #{gated_conv2d.1} parent=5 // pred_check
      _
    $region30: #{gated_conv2d.1} parent=5 // pred_check_branch
      %141 = sbr.rel (%p138) target = $region32
    $region31: #{gated_conv2d.1} parent=5 // pred_region
      %s142 = ssub.s32 %s9, 1
      %p143 = scmp.lt.s32.totalorder %s14, 1
      %s144 = scalar_select %p143, %s14, 1
      %s145 = smul.addr %s144, 3
      %s146 = smul.addr %s145, 8
      %s147 = scalar_lea.vmem %s0, %s146
      %p148 = pneg %p35
      %p149 = pneg %p32
      %p150 = pneg %p56
      %p151 = pneg %p53
      %p152 = pneg %p77
      %p153 = pneg %p74
      %p154 = pneg %p103
      %p155 = pneg %p100
      %p156 = scmp.lt.s32.totalorder %s14, 1
      %s157 = scalar_select %p156, %s14, 1
      %s158 = smul.addr %s157, 2
      %s159 = smul.addr %s158, 8
      %s160 = scalar_lea.vmem %s3, %s159
      %p161 = scmp.lt.s32.totalorder %s14, 1
      %s162 = scalar_select %p161, %s14, 1
      %s163 = smul.addr %s162, 3
      %s164 = smul.addr %s163, 8
      %s165 = scalar_lea.vmem %s0, %s164
      %p166 = scmp.lt.s32.totalorder %s14, 1
      %s167 = scalar_select %p166, %s14, 1
      %s168 = smul.addr %s167, 2
      %s169 = smul.addr %s168, 8
      %s170 = scalar_lea.vmem %s3, %s169
      %v172 = vld [vmem:[%s165] sm:$0xff]
      %v173 = vld [vmem:[%s165 + $0x8] sm:$0xff]
      %v174 = vpack.c.bf16 %v173, %v172
      %v175 = vld [vmem:[%s1] sm:$0xff]
      %v176 = vld [vmem:[%s1 + $0x8] sm:$0xff]
      %v177 = vld [vmem:[%s1 + $0x10] sm:$0xff]
      %v178 = vld [vmem:[%s1 + $0x18] sm:$0xff]
      %v179 = vld [vmem:[%s1 + $0x20] sm:$0xff]
      %v180 = vld [vmem:[%s1 + $0x28] sm:$0xff]
      %v181 = vld [vmem:[%s1 + $0x30] sm:$0xff]
      %v182 = vld [vmem:[%s1 + $0x38] sm:$0xff]
      %v183 = vld [vmem:[%s1 + $0x40] sm:$0xff]
      %v184 = vld [vmem:[%s165 + $0x1] sm:$0xff]
      %v185 = vld [vmem:[%s165 + $0x9] sm:$0xff]
      %v186 = vpack.c.bf16 %v185, %v184
      %s187 = scalar_lea.vmem %s1, 72
      %v188 = vld [vmem:[%s187] sm:$0xff]
      %v189 = vld [vmem:[%s187 + $0x8] sm:$0xff]
      %v190 = vld [vmem:[%s187 + $0x10] sm:$0xff]
      %v191 = vld [vmem:[%s187 + $0x18] sm:$0xff]
      %v192 = vld [vmem:[%s187 + $0x20] sm:$0xff]
      %v193 = vld [vmem:[%s187 + $0x28] sm:$0xff]
      %v194 = vld [vmem:[%s187 + $0x30] sm:$0xff]
      %v195 = vld [vmem:[%s187 + $0x38] sm:$0xff]
      %v196 = vld [vmem:[%s187 + $0x40] sm:$0xff]
      %v206 = vunpack.c.l.b16 %v188
      %v207 = vunpack.c.h.b16 %v188
      %v208 = vunpack.c.l.b16 %v189
      %v209 = vunpack.c.h.b16 %v189
      %v210 = vunpack.c.l.b16 %v190
      %v211 = vunpack.c.h.b16 %v190
      %v212 = vunpack.c.l.b16 %v191
      %v213 = vunpack.c.h.b16 %v191
      %v214 = vunpack.c.l.b16 %v192
      %v215 = vunpack.c.h.b16 %v192
      %v216 = vunpack.c.l.b16 %v193
      %v217 = vunpack.c.h.b16 %v193
      %v218 = vunpack.c.l.b16 %v194
      %v219 = vunpack.c.h.b16 %v194
      %v220 = vunpack.c.l.b16 %v195
      %v221 = vunpack.c.h.b16 %v195
      %v222 = vunpack.c.l.b16 %v196
      %v223 = vunpack.c.h.b16 %v196
      %v224 = vpack.c.b16 %v208, %v206
      %v225 = vpack.c.b16 %v209, %v207
      %v226 = vpack.c.b16 %v212, %v210
      %v227 = vpack.c.b16 %v213, %v211
      %v228 = vpack.c.b16 %v216, %v214
      %v229 = vpack.c.b16 %v217, %v215
      %v230 = vpack.c.b16 %v220, %v218
      %v231 = vpack.c.b16 %v221, %v219
      %v232 = vpack.c.b16 %v222, %v222
      %v233 = vpack.c.b16 %v223, %v223
      %vm242 = vcmask 588800
      %v244 = vsel %vm242, %v186, 0
      %vm246 = vcmask 1043456
      %v248 = vsel %vm246, %v232, 0
      %v251 = vsel %vm246, %v233, 0
      %253 = vmatprep.subr.bf16.mxu0 %v225
      %254 = vmatpush1.bf16.msra.mxu0 %v224
      %255 = vmatprep.subr.bf16.mxu0 %v227
      %256 = vmatpush1.bf16.msra.mxu0 %v226
      %257 = vmatprep.subr.bf16.mxu0 %v229
      %258 = vmatpush1.bf16.msra.mxu0 %v228
      %259 = vmatprep.subr.bf16.mxu0 %v231
      %260 = vmatpush1.bf16.msra.mxu0 %v230
      %261 = vmatprep.subr.bf16.mxu0 %v251
      %262 = vmatpush1.bf16.msra.mxu0 %v248
      %263 = vmatprep.subr.bf16.mxu0 0
      %264 = vmatpush1.bf16.msra.mxu0 0
      %265 = vmatprep.subr.bf16.mxu0 0
      %266 = vmatpush1.bf16.msra.mxu0 0
      %267 = vmatprep.subr.bf16.mxu0 0
      %268 = vmatpush1.bf16.msra.mxu0 0
      %269 = vmatprep.subr.bf16.mxu0 0
      %270 = vmatpush1.bf16.msra.mxu0 0
      %271 = vmatprep.subr.bf16.mxu0 0
      %272 = vmatpush1.bf16.msra.mxu0 0
      %273 = vmatprep.subr.bf16.mxu0 0
      %274 = vmatpush1.bf16.msra.mxu0 0
      %275 = vmatprep.subr.bf16.mxu0 0
      %276 = vmatpush1.bf16.msra.mxu0 0
      %277 = vmatprep.subr.bf16.mxu0 0
      %278 = vmatpush1.bf16.msra.mxu0 0
      %279 = vmatprep.subr.bf16.mxu0 0
      %280 = vmatpush1.bf16.msra.mxu0 0
      %281 = vmatprep.subr.bf16.mxu0 0
      %282 = vmatpush1.bf16.msra.mxu0 0
      %283 = vmatprep.subr.bf16.mxu0 0
      %284 = vmatpush1.bf16.msra.mxu0 0
      %285 = vmatprep.mubr.bf16.mxu0 0
      %286 = vmatmul.mubr.bf16.gmra.mrb[0].mxu0 %v244
      %v287 = vpop.f32.mrb[0].mxu0
      %v288 = vadd.f32 0.0, %v287
      %v289 = vpop.f32.mrb[0].mxu0
      %v290 = vadd.f32 0.0, %v289
      %v291 = vpop.f32.mrb[0].mxu0
      %v292 = vadd.f32 0.0, %v291
      %v293 = vpop.f32.mrb[0].mxu0
      %v294 = vadd.f32 0.0, %v293
      %295 = vdwg.mxu0
      %v305 = vunpack.c.l.b16 %v175
      %v306 = vunpack.c.h.b16 %v175
      %v307 = vunpack.c.l.b16 %v176
      %v308 = vunpack.c.h.b16 %v176
      %v309 = vunpack.c.l.b16 %v177
      %v310 = vunpack.c.h.b16 %v177
      %v311 = vunpack.c.l.b16 %v178
      %v312 = vunpack.c.h.b16 %v178
      %v313 = vunpack.c.l.b16 %v179
      %v314 = vunpack.c.h.b16 %v179
      %v315 = vunpack.c.l.b16 %v180
      %v316 = vunpack.c.h.b16 %v180
      %v317 = vunpack.c.l.b16 %v181
      %v318 = vunpack.c.h.b16 %v181
      %v319 = vunpack.c.l.b16 %v182
      %v320 = vunpack.c.h.b16 %v182
      %v321 = vunpack.c.l.b16 %v183
      %v322 = vunpack.c.h.b16 %v183
      %v323 = vpack.c.b16 %v307, %v305
      %v324 = vpack.c.b16 %v308, %v306
      %v325 = vpack.c.b16 %v311, %v309
      %v326 = vpack.c.b16 %v312, %v310
      %v327 = vpack.c.b16 %v315, %v313
      %v328 = vpack.c.b16 %v316, %v314
      %v329 = vpack.c.b16 %v319, %v317
      %v330 = vpack.c.b16 %v320, %v318
      %v331 = vpack.c.b16 %v321, %v321
      %v332 = vpack.c.b16 %v322, %v322
      %v342 = vsel %vm242, %v174, 0
      %v345 = vsel %vm246, %v331, 0
      %v348 = vsel %vm246, %v332, 0
      %350 = vmatprep.subr.bf16.mxu0 %v324
      %351 = vmatpush1.bf16.msra.mxu0 %v323
      %352 = vmatprep.subr.bf16.mxu0 %v326
      %353 = vmatpush1.bf16.msra.mxu0 %v325
      %354 = vmatprep.subr.bf16.mxu0 %v328
      %355 = vmatpush1.bf16.msra.mxu0 %v327
      %356 = vmatprep.subr.bf16.mxu0 %v330
      %357 = vmatpush1.bf16.msra.mxu0 %v329
      %358 = vmatprep.subr.bf16.mxu0 %v348
      %359 = vmatpush1.bf16.msra.mxu0 %v345
      %360 = vmatprep.subr.bf16.mxu0 0
      %361 = vmatpush1.bf16.msra.mxu0 0
      %362 = vmatprep.subr.bf16.mxu0 0
      %363 = vmatpush1.bf16.msra.mxu0 0
      %364 = vmatprep.subr.bf16.mxu0 0
      %365 = vmatpush1.bf16.msra.mxu0 0
      %366 = vmatprep.subr.bf16.mxu0 0
      %367 = vmatpush1.bf16.msra.mxu0 0
      %368 = vmatprep.subr.bf16.mxu0 0
      %369 = vmatpush1.bf16.msra.mxu0 0
      %370 = vmatprep.subr.bf16.mxu0 0
      %371 = vmatpush1.bf16.msra.mxu0 0
      %372 = vmatprep.subr.bf16.mxu0 0
      %373 = vmatpush1.bf16.msra.mxu0 0
      %374 = vmatprep.subr.bf16.mxu0 0
      %375 = vmatpush1.bf16.msra.mxu0 0
      %376 = vmatprep.subr.bf16.mxu0 0
      %377 = vmatpush1.bf16.msra.mxu0 0
      %378 = vmatprep.subr.bf16.mxu0 0
      %379 = vmatpush1.bf16.msra.mxu0 0
      %380 = vmatprep.subr.bf16.mxu0 0
      %381 = vmatpush1.bf16.msra.mxu0 0
      %382 = vmatprep.mubr.bf16.mxu0 0
      %383 = vmatmul.mubr.bf16.gmra.mrb[0].mxu0 %v342
      %v384 = vpop.f32.mrb[0].mxu0
      %v385 = vadd.f32 %v288, %v384
      %v386 = vpop.f32.mrb[0].mxu0
      %v387 = vadd.f32 %v290, %v386
      %v388 = vpop.f32.mrb[0].mxu0
      %v389 = vadd.f32 %v292, %v388
      %v390 = vpop.f32.mrb[0].mxu0
      %v391 = vadd.f32 %v294, %v390
      %392 = vdwg.mxu0
      %v393 = vld [vmem:[%s165 + $0x2] sm:$0xff]
      %v394 = vld [vmem:[%s165 + $0xa] sm:$0xff]
      %v395 = vpack.c.bf16 %v394, %v393
      %s396 = scalar_lea.vmem %s1, 144
      %v397 = vld [vmem:[%s396] sm:$0xff]
      %v398 = vld [vmem:[%s396 + $0x8] sm:$0xff]
      %v399 = vld [vmem:[%s396 + $0x10] sm:$0xff]
      %v400 = vld [vmem:[%s396 + $0x18] sm:$0xff]
      %v401 = vld [vmem:[%s396 + $0x20] sm:$0xff]
      %v402 = vld [vmem:[%s396 + $0x28] sm:$0xff]
      %v403 = vld [vmem:[%s396 + $0x30] sm:$0xff]
      %v404 = vld [vmem:[%s396 + $0x38] sm:$0xff]
      %v405 = vld [vmem:[%s396 + $0x40] sm:$0xff]
      %v415 = vunpack.c.l.b16 %v397
      %v416 = vunpack.c.h.b16 %v397
      %v417 = vunpack.c.l.b16 %v398
      %v418 = vunpack.c.h.b16 %v398
      %v419 = vunpack.c.l.b16 %v399
      %v420 = vunpack.c.h.b16 %v399
      %v421 = vunpack.c.l.b16 %v400
      %v422 = vunpack.c.h.b16 %v400
      %v423 = vunpack.c.l.b16 %v401
      %v424 = vunpack.c.h.b16 %v401
      %v425 = vunpack.c.l.b16 %v402
      %v426 = vunpack.c.h.b16 %v402
      %v427 = vunpack.c.l.b16 %v403
      %v428 = vunpack.c.h.b16 %v403
      %v429 = vunpack.c.l.b16 %v404
      %v430 = vunpack.c.h.b16 %v404
      %v431 = vunpack.c.l.b16 %v405
      %v432 = vunpack.c.h.b16 %v405
      %v433 = vpack.c.b16 %v417, %v415
      %v434 = vpack.c.b16 %v418, %v416
      %v435 = vpack.c.b16 %v421, %v419
      %v436 = vpack.c.b16 %v422, %v420
      %v437 = vpack.c.b16 %v425, %v423
      %v438 = vpack.c.b16 %v426, %v424
      %v439 = vpack.c.b16 %v429, %v427
      %v440 = vpack.c.b16 %v430, %v428
      %v441 = vpack.c.b16 %v431, %v431
      %v442 = vpack.c.b16 %v432, %v432
      %v452 = vsel %vm242, %v395, 0
      %v455 = vsel %vm246, %v441, 0
      %v458 = vsel %vm246, %v442, 0
      %460 = vmatprep.subr.bf16.mxu0 %v434
      %461 = vmatpush1.bf16.msra.mxu0 %v433
      %462 = vmatprep.subr.bf16.mxu0 %v436
      %463 = vmatpush1.bf16.msra.mxu0 %v435
      %464 = vmatprep.subr.bf16.mxu0 %v438
      %465 = vmatpush1.bf16.msra.mxu0 %v437
      %466 = vmatprep.subr.bf16.mxu0 %v440
      %467 = vmatpush1.bf16.msra.mxu0 %v439
      %468 = vmatprep.subr.bf16.mxu0 %v458
      %469 = vmatpush1.bf16.msra.mxu0 %v455
      %470 = vmatprep.subr.bf16.mxu0 0
      %471 = vmatpush1.bf16.msra.mxu0 0
      %472 = vmatprep.subr.bf16.mxu0 0
      %473 = vmatpush1.bf16.msra.mxu0 0
      %474 = vmatprep.subr.bf16.mxu0 0
      %475 = vmatpush1.bf16.msra.mxu0 0
      %476 = vmatprep.subr.bf16.mxu0 0
      %477 = vmatpush1.bf16.msra.mxu0 0
      %478 = vmatprep.subr.bf16.mxu0 0
      %479 = vmatpush1.bf16.msra.mxu0 0
      %480 = vmatprep.subr.bf16.mxu0 0
      %481 = vmatpush1.bf16.msra.mxu0 0
      %482 = vmatprep.subr.bf16.mxu0 0
      %483 = vmatpush1.bf16.msra.mxu0 0
      %484 = vmatprep.subr.bf16.mxu0 0
      %485 = vmatpush1.bf16.msra.mxu0 0
      %486 = vmatprep.subr.bf16.mxu0 0
      %487 = vmatpush1.bf16.msra.mxu0 0
      %488 = vmatprep.subr.bf16.mxu0 0
      %489 = vmatpush1.bf16.msra.mxu0 0
      %490 = vmatprep.subr.bf16.mxu0 0
      %491 = vmatpush1.bf16.msra.mxu0 0
      %492 = vmatprep.mubr.bf16.mxu0 0
      %493 = vmatmul.mubr.bf16.gmra.mrb[0].mxu0 %v452
      %v494 = vpop.f32.mrb[0].mxu0
      %v495 = vadd.f32 0.0, %v494
      %v496 = vpop.f32.mrb[0].mxu0
      %v497 = vadd.f32 0.0, %v496
      %v498 = vpop.f32.mrb[0].mxu0
      %v499 = vadd.f32 0.0, %v498
      %v500 = vpop.f32.mrb[0].mxu0
      %v501 = vadd.f32 0.0, %v500
      %502 = vdwg.mxu0
      %v503 = vadd.f32 %v385, %v495
      %v504 = vadd.f32 %v387, %v497
      %v505 = vadd.f32 %v389, %v499
      %v506 = vadd.f32 %v391, %v501
      %v507 = vld [vmem:[%s2] sm:$0x3]
      %v509 = vlaneseq
      %v510 = vshrl.u32 %v509, 7
      %v511 = vsub.s32 0, %v510
      %v512 = vrot.slane %v507, %v511
      %v513 = vlaneseq
      %v514 = vshrl.u32 %v513, 7
      %v515 = vsub.s32 1, %v514
      %v516 = vrot.slane %v507, %v515
      %v519 = vadd.f32 %v503, %v512
      %v520 = vadd.f32 %v504, %v516
      %v521 = vadd.f32 %v505, %v512
      %v522 = vadd.f32 %v506, %v516
      %v523 = vsub.f32 0.0, %v520
      %v524 = vsub.f32 0.0, %v522
      %v525 = vmul.f32 %v523, 1.442695
      %v526 = vpow.pop %v525
      %v527 = vmul.f32 %v524, 1.442695
      %v528 = vpow.pop %v527
      %v529 = vadd.f32 %v526, 1.0
      %v530 = vadd.f32 %v528, 1.0
      %v531 = vrcp.pop %v529
      %v532 = vrcp.pop %v530
      %v533 = vmul.f32 %v519, %v531
      %v534 = vmul.f32 %v521, %v532
      %535 = vst [vmem:[%s170] sm:$0xff] %v533
      %536 = vst [vmem:[%s170 + $0x8] sm:$0xff] %v534
      %p537 = scmp.lt.s32.totalorder %s14, 1
      %s538 = scalar_select %p537, %s14, 1
      %s539 = smul.addr %s538, 2
      %s540 = smul.addr %s539, 8
      %s541 = scalar_lea.vmem %s3, %s540
      // Predicated region
      $region33: #{gated_conv2d.1} parent=31 // pred_check
        %p542 = pneg %p100
      $region34: #{gated_conv2d.1} parent=31 // pred_check_branch
        %544 = sbr.rel (%p542) target = $region36
      $region35: #{gated_conv2d.1} parent=31 // pred_region
        _
      $region36: #{gated_conv2d.1} parent=31 // pred_fallthru
        _
    $region32: #{gated_conv2d.1} parent=5 // pred_fallthru
      _
    %p545 = scmp.le.s32.totalorder 2, %s9
    // Predicated region
    $region37: #{gated_conv2d.1} parent=5 // pred_check
      %p546 = pneg %p545
    $region38: #{gated_conv2d.1} parent=5 // pred_check_branch
      %548 = sbr.rel (%p546) target = $region40
    $region39: #{gated_conv2d.1} parent=5 // pred_region
      %s549 = ssub.s32 %s9, 2
      // Predicated region
      $region41: #{gated_conv2d.1} parent=39 // pred_check
        %p550 = pneg %p106
      $region42: #{gated_conv2d.1} parent=39 // pred_check_branch
        %552 = sbr.rel (%p550) target = $region44
      $region43: #{gated_conv2d.1} parent=39 // pred_region
        %p553 = scmp.lt.s32.totalorder %s15, 1
        %s554 = scalar_select %p553, %s15, 1
        %s555 = smul.addr %s554, 2
        %s556 = smul.addr %s555, 8
        %s557 = scalar_lea.vmem %s3, %s556
      $region44: #{gated_conv2d.1} parent=39 // pred_fallthru
        _
    $region40: #{gated_conv2d.1} parent=5 // pred_fallthru
      _
  $region6: #{gated_conv2d.1} parent=0 // loop_footer
    %s13 = sadd.s32 1, %s9
  $region7: #{gated_conv2d.1} parent=0 // loop_footer_branch
    %8 = sbr.rel target = $region3
  $region8: #{gated_conv2d.1} parent=0 // loop_exit
    _

</llo_original>
